<compile_context>
chip_gen: v5e
topology: v5e:2x2
jax: 0.10.0
libtpu: 0.0.40
codegen_flags: <defaults>
</compile_context>

<pallas_src>
import math

import jax
import jax.numpy as jnp
from jax.experimental import pallas as pl
from jax.experimental.pallas import tpu as pltpu

_LN_EPS = 1e-5
_INV_SQRT2 = 1.0 / math.sqrt(2.0)


def _gelu_exact(x):
    # nn.GELU() default = exact erf formulation.
    return 0.5 * x * (1.0 + jax.lax.erf(x * _INV_SQRT2))


def twolp_kernel(x_ref, w1_ref, b1_ref, g2_ref, be2_ref, w2_ref, b2_ref, o_ref):
    # --- LayerNorm1 (affine already folded into w1/b1): standardize only, f32.
    x = x_ref[...].astype(jnp.float32)
    mean1 = jnp.mean(x, axis=-1, keepdims=True)
    c1 = x - mean1
    var1 = jnp.mean(c1 * c1, axis=-1, keepdims=True)
    h = c1 * jax.lax.rsqrt(var1 + _LN_EPS)

    # --- dense1: MXU matmul in the weights' native dtype, f32 accumulation.
    h = jnp.dot(h.astype(w1_ref.dtype), w1_ref[...],
                preferred_element_type=jnp.float32)
    h = h + b1_ref[...].astype(jnp.float32)

    # --- LayerNorm2 (with affine), f32.
    mean2 = jnp.mean(h, axis=-1, keepdims=True)
    c2 = h - mean2
    var2 = jnp.mean(c2 * c2, axis=-1, keepdims=True)
    h = c2 * jax.lax.rsqrt(var2 + _LN_EPS)
    h = h * g2_ref[...].astype(jnp.float32) + be2_ref[...].astype(jnp.float32)

    # --- exact GELU (erf on the EUP).
    h = _gelu_exact(h)

    # --- dense2: native-dtype MXU matmul, f32 accumulation, lane-dense store.
    out = jnp.dot(h.astype(w2_ref.dtype), w2_ref[...],
                  preferred_element_type=jnp.float32)
    out = out + b2_ref[...].astype(jnp.float32)

    o_ref[...] = out.astype(o_ref.dtype)


def twolp_forward(x, params, *, tile_m=256):
    """x: (..., in_features) -> (..., out_features)."""
    g1, be1, w1, b1, g2, be2, w2, b2 = params
    in_f, hid_f = w1.shape
    out_f = w2.shape[1]
    assert x.shape[-1] == in_f

    # Fold LayerNorm1's affine into dense1 (exact algebra):
    #   (z * g1 + be1) @ w1 + b1 == z @ (g1^T * w1) + (be1 @ w1 + b1)
    w1f = (g1.reshape(in_f, 1).astype(jnp.float32)
           * w1.astype(jnp.float32)).astype(w1.dtype)
    b1f = (b1.astype(jnp.float32)
           + jnp.dot(be1.astype(jnp.float32), w1.astype(jnp.float32)))  # keep f32

    # Lane-dense output: pad output features to a multiple of 128 so stores are
    # unmasked full-lane vst; sliced back at the end.
    out_p = ((out_f + 127) // 128) * 128
    if out_p != out_f:
        w2p = jnp.pad(w2, ((0, 0), (0, out_p - out_f)))
        b2p = jnp.pad(b2, ((0, 0), (0, out_p - out_f)))
    else:
        w2p, b2p = w2, b2

    lead_shape = x.shape[:-1]
    rows = math.prod(lead_shape) if lead_shape else 1
    x2 = x.reshape(rows, in_f)

    # Pad rows only to the next multiple of 8 (the (8,128) block rule); the
    # ragged tail w.r.t. tile_m is handled by pl.cdiv + boundary masking.
    rows_p = ((rows + 7) // 8) * 8
    if rows_p != rows:
        x2 = jnp.pad(x2, ((0, rows_p - rows), (0, 0)))

    tile_m = max(8, min(int(tile_m), rows_p))
    tile_m = (tile_m // 8) * 8
    n_tiles = pl.cdiv(rows_p, tile_m)
    grid = (n_tiles,)

    # Explicit scoped-VMEM budget (defaults: 16 MiB v5e / 32 MiB v6e+).
    w_bytes = jnp.dtype(w1.dtype).itemsize
    x_bytes = jnp.dtype(x.dtype).itemsize
    est = 2 * tile_m * (in_f * x_bytes + out_p * x_bytes)   # dbl-buffered x / out tiles
    est += 2 * w_bytes * (in_f * hid_f + hid_f * out_p)     # weights (resident)
    est += 2 * 4 * (3 * hid_f + out_p)                      # biases / gamma / beta
    est += 3 * 4 * tile_m * hid_f                           # in-flight f32 hidden acts
    vmem_limit = int(min(100 * 2**20, max(32 * 2**20, 2 * est)))

    # Advisory cost estimate for the XLA scheduler.
    flops = 2 * rows_p * (in_f * hid_f + hid_f * out_p) + 10 * rows_p * (in_f + hid_f)
    transcendentals = rows_p * (hid_f + 2)                  # erf + two rsqrt per row
    bytes_accessed = (rows_p * (in_f + out_p) * x_bytes
                      + w_bytes * (in_f * hid_f + hid_f * out_p)
                      + 4 * (3 * hid_f + out_p))
    cost = pl.CostEstimate(flops=flops, transcendentals=transcendentals,
                           bytes_accessed=bytes_accessed)

    full = lambda shape: pl.BlockSpec(shape, lambda i: (0,) * len(shape))

    out2 = pl.pallas_call(
        twolp_kernel,
        out_shape=jax.ShapeDtypeStruct((rows_p, out_p), x.dtype),
        grid_spec=pltpu.PrefetchScalarGridSpec(
            num_scalar_prefetch=0,
            grid=grid,
            in_specs=[
                pl.BlockSpec((tile_m, in_f), lambda i: (i, 0)),  # x row-tile
                full((in_f, hid_f)),   # dense1 weight (gamma1 folded in)
                full((1, hid_f)),      # dense1 bias  (beta1 folded in, f32)
                full((1, hid_f)),      # norm2 gamma
                full((1, hid_f)),      # norm2 beta
                full((hid_f, out_p)),  # dense2 weight (lane-padded)
                full((1, out_p)),      # dense2 bias   (lane-padded)
            ],
            out_specs=pl.BlockSpec((tile_m, out_p), lambda i: (i, 0)),
        ),
        compiler_params=pltpu.CompilerParams(
            dimension_semantics=("parallel",),
            vmem_limit_bytes=vmem_limit),
        cost_estimate=cost,
    )(x2, w1f, b1f, g2, be2, w2p, b2p)

    out2 = out2[:rows, :out_f]
    return out2.reshape(*lead_shape, out_f)


def init_twolp_params(key, in_features, out_features, hidden_features=None,
                      dtype=jnp.float32):
    hidden_features = in_features * 2 if hidden_features is None else hidden_features
    ks = jax.random.split(key, 6)
    g1 = 1.0 + 0.01 * jax.random.normal(ks[0], (1, in_features), dtype)
    be1 = 0.01 * jax.random.normal(ks[1], (1, in_features), dtype)
    g2 = 1.0 + 0.01 * jax.random.normal(ks[2], (1, hidden_features), dtype)
    be2 = 0.01 * jax.random.normal(ks[3], (1, hidden_features), dtype)
    lim1 = 1.0 / math.sqrt(in_features)
    w1 = jax.random.uniform(ks[4], (in_features, hidden_features), dtype, -lim1, lim1)
    b1 = jnp.zeros((1, hidden_features), dtype)
    lim2 = 1.0 / math.sqrt(hidden_features)
    w2 = jax.random.uniform(ks[5], (hidden_features, out_features), dtype, -lim2, lim2)
    b2 = jnp.zeros((1, out_features), dtype)
    return (g1, be1, w1, b1, g2, be2, w2, b2)


def twolp_reference(x, params):
    g1, be1, w1, b1, g2, be2, w2, b2 = params

    def ln(v, g, b, eps=_LN_EPS):
        m = jnp.mean(v, axis=-1, keepdims=True)
        c = v - m
        var = jnp.mean(c * c, axis=-1, keepdims=True)
        return c * jax.lax.rsqrt(var + eps) * g + b

    h = ln(x, g1[0], be1[0])
    h = h @ w1 + b1[0]
    h = ln(h, g2[0], be2[0])
    h = 0.5 * h * (1.0 + jax.lax.erf(h / math.sqrt(2.0)))
    return h @ w2 + b2[0]


if __name__ == "__main__":
    key = jax.random.PRNGKey(0)
    k_x, k_p = jax.random.split(key)

    batch, seq, in_features, out_features = 2, 8, 32, 32
    x = jax.random.normal(k_x, (batch, seq, in_features), jnp.float32)

    params = init_twolp_params(k_p, in_features, out_features)

    out = twolp_forward(x, params)
    out = jax.block_until_ready(out)

    ref = twolp_reference(x, params)
    assert out.shape == (batch, seq, out_features)
    assert jnp.allclose(out, ref, atol=1e-4, rtol=1e-4), \
        float(jnp.max(jnp.abs(out - ref)))

    print("KERNEL_OK")
</pallas_src>

<mosaic_0001>
module attributes {stable_mosaic.version = 11 : i64} {
  func.func @twolp_kernel(%arg0: i32, %arg1: memref<16x32xf32, #tpu.memory_space<vmem>>, %arg2: memref<32x64xf32, #tpu.memory_space<vmem>>, %arg3: memref<1x64xf32, #tpu.memory_space<vmem>>, %arg4: memref<1x64xf32, #tpu.memory_space<vmem>>, %arg5: memref<1x64xf32, #tpu.memory_space<vmem>>, %arg6: memref<64x128xf32, #tpu.memory_space<vmem>>, %arg7: memref<1x128xf32, #tpu.memory_space<vmem>>, %arg8: memref<16x128xf32, #tpu.memory_space<vmem>>) attributes {dimension_semantics = [#tpu.dimension_semantics<parallel>], iteration_bounds = array<i64: 1>, scalar_prefetch = 0 : i64, scratch_operands = 0 : i64, tpu.core_type = #tpu.core_type<tc>, window_params = [{transform_indices = @transform_0, window_bounds = array<i64: 16, 32>}, {pipeline_mode = #tpu.pipeline_mode<synchronous>, transform_indices = @transform_1, window_bounds = array<i64: 32, 64>}, {pipeline_mode = #tpu.pipeline_mode<synchronous>, transform_indices = @transform_2, window_bounds = array<i64: 1, 64>}, {pipeline_mode = #tpu.pipeline_mode<synchronous>, transform_indices = @transform_3, window_bounds = array<i64: 1, 64>}, {pipeline_mode = #tpu.pipeline_mode<synchronous>, transform_indices = @transform_4, window_bounds = array<i64: 1, 64>}, {pipeline_mode = #tpu.pipeline_mode<synchronous>, transform_indices = @transform_5, window_bounds = array<i64: 64, 128>}, {pipeline_mode = #tpu.pipeline_mode<synchronous>, transform_indices = @transform_6, window_bounds = array<i64: 1, 128>}, {transform_indices = @transform_7, window_bounds = array<i64: 16, 128>}]} {
    %c0 = arith.constant 0 : index
    %c0_0 = arith.constant 0 : index
    %0 = vector.load %arg1[%c0, %c0_0] : memref<16x32xf32, #tpu.memory_space<vmem>>, vector<16x32xf32>
    %cst = arith.constant dense<0.000000e+00> : vector<16xf32>
    %1 = vector.multi_reduction <add>, %0, %cst [1] : vector<16x32xf32> to vector<16xf32>
    %2 = vector.shape_cast %1 : vector<16xf32> to vector<16x1xf32>
    %cst_1 = arith.constant 3.200000e+01 : f32
    %3 = vector.broadcast %cst_1 : f32 to vector<16x1xf32>
    %4 = arith.divf %2, %3 : vector<16x1xf32>
    %5 = vector.broadcast %4 : vector<16x1xf32> to vector<16x32xf32>
    %6 = arith.subf %0, %5 : vector<16x32xf32>
    %7 = arith.mulf %6, %6 : vector<16x32xf32>
    %cst_2 = arith.constant dense<0.000000e+00> : vector<16xf32>
    %8 = vector.multi_reduction <add>, %7, %cst_2 [1] : vector<16x32xf32> to vector<16xf32>
    %9 = vector.shape_cast %8 : vector<16xf32> to vector<16x1xf32>
    %cst_3 = arith.constant 3.200000e+01 : f32
    %10 = vector.broadcast %cst_3 : f32 to vector<16x1xf32>
    %11 = arith.divf %9, %10 : vector<16x1xf32>
    %cst_4 = arith.constant 9.99999974E-6 : f32
    %12 = vector.broadcast %cst_4 : f32 to vector<16x1xf32>
    %13 = arith.addf %11, %12 : vector<16x1xf32>
    %14 = math.rsqrt %13 : vector<16x1xf32>
    %15 = vector.broadcast %14 : vector<16x1xf32> to vector<16x32xf32>
    %16 = arith.mulf %6, %15 : vector<16x32xf32>
    %c0_5 = arith.constant 0 : index
    %c0_6 = arith.constant 0 : index
    %17 = vector.load %arg2[%c0_5, %c0_6] : memref<32x64xf32, #tpu.memory_space<vmem>>, vector<32x64xf32>
    %cst_7 = arith.constant dense<0.000000e+00> : vector<16x64xf32>
    %18 = tpu.matmul %16, %17, %cst_7 {dimension_numbers = #tpu.dot_dimension_numbers<[1], [0], [0], [1], [0, 0, 1, 1], [], []>} : vector<16x32xf32>, vector<32x64xf32>, vector<16x64xf32> -> vector<16x64xf32>
    %c0_8 = arith.constant 0 : index
    %c0_9 = arith.constant 0 : index
    %19 = vector.load %arg3[%c0_8, %c0_9] : memref<1x64xf32, #tpu.memory_space<vmem>>, vector<1x64xf32>
    %20 = vector.broadcast %19 : vector<1x64xf32> to vector<16x64xf32>
    %21 = arith.addf %18, %20 : vector<16x64xf32>
    %cst_10 = arith.constant dense<0.000000e+00> : vector<16xf32>
    %22 = vector.multi_reduction <add>, %21, %cst_10 [1] : vector<16x64xf32> to vector<16xf32>
    %23 = vector.shape_cast %22 : vector<16xf32> to vector<16x1xf32>
    %cst_11 = arith.constant 6.400000e+01 : f32
    %24 = vector.broadcast %cst_11 : f32 to vector<16x1xf32>
    %25 = arith.divf %23, %24 : vector<16x1xf32>
    %26 = vector.broadcast %25 : vector<16x1xf32> to vector<16x64xf32>
    %27 = arith.subf %21, %26 : vector<16x64xf32>
    %28 = arith.mulf %27, %27 : vector<16x64xf32>
    %cst_12 = arith.constant dense<0.000000e+00> : vector<16xf32>
    %29 = vector.multi_reduction <add>, %28, %cst_12 [1] : vector<16x64xf32> to vector<16xf32>
    %30 = vector.shape_cast %29 : vector<16xf32> to vector<16x1xf32>
    %cst_13 = arith.constant 6.400000e+01 : f32
    %31 = vector.broadcast %cst_13 : f32 to vector<16x1xf32>
    %32 = arith.divf %30, %31 : vector<16x1xf32>
    %cst_14 = arith.constant 9.99999974E-6 : f32
    %33 = vector.broadcast %cst_14 : f32 to vector<16x1xf32>
    %34 = arith.addf %32, %33 : vector<16x1xf32>
    %35 = math.rsqrt %34 : vector<16x1xf32>
    %36 = vector.broadcast %35 : vector<16x1xf32> to vector<16x64xf32>
    %37 = arith.mulf %27, %36 : vector<16x64xf32>
    %c0_15 = arith.constant 0 : index
    %c0_16 = arith.constant 0 : index
    %38 = vector.load %arg4[%c0_15, %c0_16] : memref<1x64xf32, #tpu.memory_space<vmem>>, vector<1x64xf32>
    %39 = vector.broadcast %38 : vector<1x64xf32> to vector<16x64xf32>
    %40 = arith.mulf %37, %39 : vector<16x64xf32>
    %c0_17 = arith.constant 0 : index
    %c0_18 = arith.constant 0 : index
    %41 = vector.load %arg5[%c0_17, %c0_18] : memref<1x64xf32, #tpu.memory_space<vmem>>, vector<1x64xf32>
    %42 = vector.broadcast %41 : vector<1x64xf32> to vector<16x64xf32>
    %43 = arith.addf %40, %42 : vector<16x64xf32>
    %cst_19 = arith.constant 5.000000e-01 : f32
    %44 = vector.broadcast %cst_19 : f32 to vector<16x64xf32>
    %45 = arith.mulf %44, %43 : vector<16x64xf32>
    %cst_20 = arith.constant 0.707106769 : f32
    %46 = vector.broadcast %cst_20 : f32 to vector<16x64xf32>
    %47 = arith.mulf %43, %46 : vector<16x64xf32>
    %48 = math.erf %47 : vector<16x64xf32>
    %cst_21 = arith.constant 1.000000e+00 : f32
    %49 = vector.broadcast %cst_21 : f32 to vector<16x64xf32>
    %50 = arith.addf %49, %48 : vector<16x64xf32>
    %51 = arith.mulf %45, %50 : vector<16x64xf32>
    %c0_22 = arith.constant 0 : index
    %c0_23 = arith.constant 0 : index
    %52 = vector.load %arg6[%c0_22, %c0_23] : memref<64x128xf32, #tpu.memory_space<vmem>>, vector<64x128xf32>
    %cst_24 = arith.constant dense<0.000000e+00> : vector<16x128xf32>
    %53 = tpu.matmul %51, %52, %cst_24 {dimension_numbers = #tpu.dot_dimension_numbers<[1], [0], [0], [1], [0, 0, 1, 1], [], []>} : vector<16x64xf32>, vector<64x128xf32>, vector<16x128xf32> -> vector<16x128xf32>
    %c0_25 = arith.constant 0 : index
    %c0_26 = arith.constant 0 : index
    %54 = vector.load %arg7[%c0_25, %c0_26] : memref<1x128xf32, #tpu.memory_space<vmem>>, vector<1x128xf32>
    %55 = vector.broadcast %54 : vector<1x128xf32> to vector<16x128xf32>
    %56 = arith.addf %53, %55 : vector<16x128xf32>
    %c0_27 = arith.constant 0 : index
    %c0_28 = arith.constant 0 : index
    %57 = vector.load %arg8[%c0_27, %c0_28] : memref<16x128xf32, #tpu.memory_space<vmem>>, vector<16x128xf32>
    tpu.vector_store %arg8[%c0_27, %c0_28], %56 {strides = array<i32>} : memref<16x128xf32, #tpu.memory_space<vmem>>, vector<16x128xf32>,
    return
  }
  func.func @transform_0(%arg0: i32) -> (i32, i32) {
    %c0_i32 = arith.constant 0 : i32
    %c0_i32_0 = arith.constant 0 : i32
    return %arg0, %c0_i32 : i32, i32
  }
  func.func @transform_1(%arg0: i32) -> (i32, i32) {
    %c0_i32 = arith.constant 0 : i32
    %c0_i32_0 = arith.constant 0 : i32
    %c0_i32_1 = arith.constant 0 : i32
    return %c0_i32, %c0_i32_0 : i32, i32
  }
  func.func @transform_2(%arg0: i32) -> (i32, i32) {
    %c0_i32 = arith.constant 0 : i32
    %c0_i32_0 = arith.constant 0 : i32
    %c0_i32_1 = arith.constant 0 : i32
    return %c0_i32, %c0_i32_0 : i32, i32
  }
  func.func @transform_3(%arg0: i32) -> (i32, i32) {
    %c0_i32 = arith.constant 0 : i32
    %c0_i32_0 = arith.constant 0 : i32
    %c0_i32_1 = arith.constant 0 : i32
    return %c0_i32, %c0_i32_0 : i32, i32
  }
  func.func @transform_4(%arg0: i32) -> (i32, i32) {
    %c0_i32 = arith.constant 0 : i32
    %c0_i32_0 = arith.constant 0 : i32
    %c0_i32_1 = arith.constant 0 : i32
    return %c0_i32, %c0_i32_0 : i32, i32
  }
  func.func @transform_5(%arg0: i32) -> (i32, i32) {
    %c0_i32 = arith.constant 0 : i32
    %c0_i32_0 = arith.constant 0 : i32
    %c0_i32_1 = arith.constant 0 : i32
    return %c0_i32, %c0_i32_0 : i32, i32
  }
  func.func @transform_6(%arg0: i32) -> (i32, i32) {
    %c0_i32 = arith.constant 0 : i32
    %c0_i32_0 = arith.constant 0 : i32
    %c0_i32_1 = arith.constant 0 : i32
    return %c0_i32, %c0_i32_0 : i32, i32
  }
  func.func @transform_7(%arg0: i32) -> (i32, i32) {
    %c0_i32 = arith.constant 0 : i32
    %c0_i32_0 = arith.constant 0 : i32
    return %arg0, %c0_i32 : i32, i32
  }
}

</mosaic_0001>

<llo_original>
// kernel: tpu_custom_call.1
$region0: #{tpu_custom_call.1}
  #allocation0 [shape = 'u32[]', space=smem, size = 0x4, offset = 0x4, fixed_abs, tag = 'smem constant byte address 0x4 - core index']
  #allocation1 [shape = 'u32[72,128]{1,0:T(1,128)}', space=vmem, size = 0x9000, scoped, tag = 'internal scratch']
  %s0 = inlined_call_operand.hbm [shape: f32[16,32], index: 0, kind: input, shape index: {}]
  %s1 = inlined_call_operand.hbm [shape: f32[32,64], index: 1, kind: input, shape index: {}]
  %s2 = inlined_call_operand.vmem [shape: f32[1,64], index: 2, kind: input, shape index: {}]
  %s3 = inlined_call_operand.vmem [shape: f32[1,64], index: 3, kind: input, shape index: {}]
  %s4 = inlined_call_operand.vmem [shape: f32[1,64], index: 4, kind: input, shape index: {}]
  %s5 = inlined_call_operand.hbm [shape: f32[64,128], index: 5, kind: input, shape index: {}]
  %s6 = inlined_call_operand.vmem [shape: f32[1,128], index: 6, kind: input, shape index: {}]
  %s7 = inlined_call_operand.hbm [shape: f32[16,128], index: 7, kind: output, shape index: {}]
  %s8 = sld [smem:[#allocation0]]
  $region50: #{tpu_custom_call.1} parent=0
    _
  %s10 = ssub.s32 1, %s8
  %s11 = scalar_select 0, %s10, %s8
  $region1: #{tpu_custom_call.1} parent=0
    #allocation2 [shape = 'u8[8192]{0}', space=vmem, size = 0x2000, scoped, tag = 'input window, operand 0, single buffered']
    #allocation3 [shape = 's32[1]{0}', space=sflag, size = 0x4, scoped, tag = 'scoped memory for tpu_custom_call.1']
    #allocation4 [shape = 's32[1]{0}', space=sflag, size = 0x4, scoped, tag = 'scoped memory for tpu_custom_call.1']
    #allocation5 [shape = 'u8[16384]{0}', space=vmem, size = 0x4000, scoped, tag = 'input window, operand 1, single buffered']
    #allocation6 [shape = 's32[1]{0}', space=sflag, size = 0x4, scoped, tag = 'scoped memory for tpu_custom_call.1']
    #allocation7 [shape = 'u8[32768]{0}', space=vmem, size = 0x8000, scoped, tag = 'input window, operand 5, single buffered']
    #allocation8 [shape = 'u8[8192]{0}', space=vmem, size = 0x2000, scoped, tag = 'output window, operand 0, single buffered']
    %12 = vsyncpa [#allocation3], 0
    %13 = vsyncpa [#allocation6], 0
    %14 = vsyncpa [#allocation4], 0
    // Predicated region
    $region2: #{tpu_custom_call.1} parent=1 // pred_check
      _
    $region3: #{tpu_custom_call.1} parent=1 // pred_check_branch
      %16 = sbr.rel (0) target = $region5
    $region4: #{tpu_custom_call.1} parent=1 // pred_region
      %18 = vsyncadd [#allocation3], 0
      %s19 = sshll.u32 %s0, 4
      %s20 = int_to_ptr.hbm [resolvable:$true] %s19
      %s21 = sshll.u32 [#allocation2], 4
      %s22 = int_to_ptr.vmem [resolvable:$true] %s21
      %27 = dma.hbm_to_vmem [thread:$0]  %s20, 256, %s22, [#allocation3], 128, 128, 8
    $region5: #{tpu_custom_call.1} parent=1 // pred_fallthru
      _
    // Predicated region
    $region6: #{tpu_custom_call.1} parent=1 // pred_check
      _
    $region7: #{tpu_custom_call.1} parent=1 // pred_check_branch
      %29 = sbr.rel (0) target = $region9
    $region8: #{tpu_custom_call.1} parent=1 // pred_region
      %31 = vsyncadd [#allocation6], 0
      %s32 = sshll.u32 %s1, 4
      %s33 = int_to_ptr.hbm [resolvable:$true] %s32
      %s34 = sshll.u32 [#allocation5], 4
      %s35 = int_to_ptr.vmem [resolvable:$true] %s34
      %40 = dma.hbm_to_vmem [thread:$0]  %s33, 512, %s35, [#allocation6], 128, 128, 8
    $region9: #{tpu_custom_call.1} parent=1 // pred_fallthru
      _
    // Predicated region
    $region10: #{tpu_custom_call.1} parent=1 // pred_check
      _
    $region11: #{tpu_custom_call.1} parent=1 // pred_check_branch
      %42 = sbr.rel (0) target = $region13
    $region12: #{tpu_custom_call.1} parent=1 // pred_region
      _
    $region13: #{tpu_custom_call.1} parent=1 // pred_fallthru
      _
    // Predicated region
    $region14: #{tpu_custom_call.1} parent=1 // pred_check
      _
    $region15: #{tpu_custom_call.1} parent=1 // pred_check_branch
      %44 = sbr.rel (0) target = $region17
    $region16: #{tpu_custom_call.1} parent=1 // pred_region
      _
    $region17: #{tpu_custom_call.1} parent=1 // pred_fallthru
      _
    // Predicated region
    $region18: #{tpu_custom_call.1} parent=1 // pred_check
      _
    $region19: #{tpu_custom_call.1} parent=1 // pred_check_branch
      %46 = sbr.rel (0) target = $region21
    $region20: #{tpu_custom_call.1} parent=1 // pred_region
      _
    $region21: #{tpu_custom_call.1} parent=1 // pred_fallthru
      _
    // Predicated region
    $region22: #{tpu_custom_call.1} parent=1 // pred_check
      _
    $region23: #{tpu_custom_call.1} parent=1 // pred_check_branch
      %48 = sbr.rel (0) target = $region25
    $region24: #{tpu_custom_call.1} parent=1 // pred_region
      %50 = vsyncadd [#allocation6], 0
      %s51 = sshll.u32 %s5, 4
      %s52 = int_to_ptr.hbm [resolvable:$true] %s51
      %s53 = sshll.u32 [#allocation7], 4
      %s54 = int_to_ptr.vmem [resolvable:$true] %s53
      %59 = dma.hbm_to_vmem [thread:$0]  %s52, 1024, %s54, [#allocation6], 128, 128, 8
    $region25: #{tpu_custom_call.1} parent=1 // pred_fallthru
      _
    // Predicated region
    $region26: #{tpu_custom_call.1} parent=1 // pred_check
      _
    $region27: #{tpu_custom_call.1} parent=1 // pred_check_branch
      %61 = sbr.rel (0) target = $region29
    $region28: #{tpu_custom_call.1} parent=1 // pred_region
      _
    $region29: #{tpu_custom_call.1} parent=1 // pred_fallthru
      _
    // Predicated region
    $region30: #{tpu_custom_call.1} parent=1 // pred_check
      _
    $region31: #{tpu_custom_call.1} parent=1 // pred_check_branch
      %63 = sbr.rel (0) target = $region33
    $region32: #{tpu_custom_call.1} parent=1 // pred_region
      %65 = dma.done [#allocation3], 256
    $region33: #{tpu_custom_call.1} parent=1 // pred_fallthru
      _
    // Predicated region
    $region34: #{tpu_custom_call.1} parent=1 // pred_check
      _
    $region35: #{tpu_custom_call.1} parent=1 // pred_check_branch
      %67 = sbr.rel (0) target = $region37
    $region36: #{tpu_custom_call.1} parent=1 // pred_region
      %69 = dma.done [#allocation6], 512
    $region37: #{tpu_custom_call.1} parent=1 // pred_fallthru
      _
    // Predicated region
    $region38: #{tpu_custom_call.1} parent=1 // pred_check
      _
    $region39: #{tpu_custom_call.1} parent=1 // pred_check_branch
      %71 = sbr.rel (0) target = $region41
    $region40: #{tpu_custom_call.1} parent=1 // pred_region
      %73 = dma.done [#allocation6], 1024
    $region41: #{tpu_custom_call.1} parent=1 // pred_fallthru
      _
    %v74 = vld [vmem:[#allocation2] sm:$0xff]
    %v75 = vld [vmem:[#allocation2 + $0x8] sm:$0xff]
    %vm76 = vcmask 261120
    %v77 = vsel %vm76, %v74, 0.0
    %78 = vadd.xlane.f32.xlu0 %v77
    %v79 = vpop.xlane.xlu0 %78
    %v80 = vsel %vm76, %v75, 0.0
    %81 = vadd.xlane.f32.xlu0 %v80
    %v82 = vpop.xlane.xlu0 %81
    %v83 = vrcp.pop 32.0
    %v84 = vmul.f32 32.0, %v83
    %v85 = vsub.f32 1.0, %v84
    %v86 = vmul.f32 %v83, %v85
    %v87 = vadd.f32 %v83, %v86
    %vm88 = vweird.f32 %v83
    %v89 = vsel %vm88, %v83, %v87
    %v90 = vmul.f32 %v79, %v89
    %v91 = vmul.f32 %v82, %v89
    %v92 = vsub.f32 %v74, %v90
    %v93 = vsub.f32 %v75, %v91
    %v94 = vmul.f32 %v92, %v92
    %v95 = vmul.f32 %v93, %v93
    %v96 = vsel %vm76, %v94, 0.0
    %97 = vadd.xlane.f32.xlu0 %v96
    %v98 = vpop.xlane.xlu0 %97
    %v99 = vsel %vm76, %v95, 0.0
    %100 = vadd.xlane.f32.xlu0 %v99
    %v101 = vpop.xlane.xlu0 %100
    %v102 = vmul.f32 %v98, %v89
    %v103 = vmul.f32 %v101, %v89
    %v104 = vadd.f32 %v102, 1e-05
    %v105 = vadd.f32 %v103, 1e-05
    %v106 = vrsqrt.pop %v104
    %v107 = vmul.f32 %v106, %v104
    %v108 = vmul.f32 %v107, %v106
    %v109 = vmul.f32 0.5, %v108
    %v110 = vsub.f32 1.5, %v109
    %v111 = vmul.f32 %v106, %v110
    %vm112 = vweird.f32 %v104
    %vm113 = vweird.f32 %v106
    %vm114 = vmor %vm112, %vm113
    %v115 = vsel %vm114, %v106, %v111
    %v116 = vrsqrt.pop %v105
    %v117 = vmul.f32 %v116, %v105
    %v118 = vmul.f32 %v117, %v116
    %v119 = vmul.f32 0.5, %v118
    %v120 = vsub.f32 1.5, %v119
    %v121 = vmul.f32 %v116, %v120
    %vm122 = vweird.f32 %v105
    %vm123 = vweird.f32 %v116
    %vm124 = vmor %vm122, %vm123
    %v125 = vsel %vm124, %v116, %v121
    %v126 = vmul.f32 %v92, %v115
    %v127 = vmul.f32 %v93, %v125
    %v128 = vld [vmem:[#allocation5] sm:$0xff]
    %v129 = vld [vmem:[#allocation5 + $0x8] sm:$0xff]
    %v130 = vld [vmem:[#allocation5 + $0x10] sm:$0xff]
    %v131 = vld [vmem:[#allocation5 + $0x18] sm:$0xff]
    %v132 = vld [vmem:[%s2] sm:$0x1]
    %v134 = vperm.slane %v132, 0
    %v137 = vsel %vm76, %v126, 0
    %v140 = vsel %vm76, %v127, 0
    %142 = vmatpush.msra.mxu0 0.0
    %143 = vmatpush.msra.mxu0 0.0
    %144 = vmatpush.msra.mxu0 0.0
    %145 = vmatpush.msra.mxu0 0.0
    %146 = vmatpush.msra.mxu0 0.0
    %147 = vmatpush.msra.mxu0 0.0
    %148 = vmatpush.msra.mxu0 0.0
    %149 = vmatpush.msra.mxu0 0.0
    %150 = vmatpush.msra.mxu0 0.0
    %151 = vmatpush.msra.mxu0 0.0
    %152 = vmatpush.msra.mxu0 0.0
    %153 = vmatpush.msra.mxu0 0.0
    %154 = vmatpush.msra.mxu0 %v131
    %155 = vmatpush.msra.mxu0 %v130
    %156 = vmatpush.msra.mxu0 %v129
    %157 = vmatpush.msra.mxu0 %v128
    %158 = vmatmul.f32.gmra.mxu0 %v137
    %v159 = vpop.f32.mrf.mxu0
    %v160 = vadd.f32 %v134, %v159
    %161 = vmatmul.f32.gmra.mxu0 %v140
    %v162 = vpop.f32.mrf.mxu0
    %v163 = vadd.f32 %v134, %v162
    %164 = vdwg.mxu0
    %vm165 = vcmask 523264
    %v166 = vsel %vm165, %v160, 0.0
    %167 = vadd.xlane.f32.xlu0 %v166
    %v168 = vpop.xlane.xlu0 %167
    %v169 = vsel %vm165, %v163, 0.0
    %170 = vadd.xlane.f32.xlu0 %v169
    %v171 = vpop.xlane.xlu0 %170
    %v172 = vrcp.pop 64.0
    %v173 = vmul.f32 64.0, %v172
    %v174 = vsub.f32 1.0, %v173
    %v175 = vmul.f32 %v172, %v174
    %v176 = vadd.f32 %v172, %v175
    %vm177 = vweird.f32 %v172
    %v178 = vsel %vm177, %v172, %v176
    %v179 = vmul.f32 %v168, %v178
    %v180 = vmul.f32 %v171, %v178
    %v181 = vsub.f32 %v160, %v179
    %v182 = vsub.f32 %v163, %v180
    %v183 = vmul.f32 %v181, %v181
    %v184 = vmul.f32 %v182, %v182
    %v185 = vsel %vm165, %v183, 0.0
    %186 = vadd.xlane.f32.xlu0 %v185
    %v187 = vpop.xlane.xlu0 %186
    %v188 = vsel %vm165, %v184, 0.0
    %189 = vadd.xlane.f32.xlu0 %v188
    %v190 = vpop.xlane.xlu0 %189
    %v191 = vmul.f32 %v187, %v178
    %v192 = vmul.f32 %v190, %v178
    %v193 = vadd.f32 %v191, 1e-05
    %v194 = vadd.f32 %v192, 1e-05
    %v195 = vrsqrt.pop %v193
    %v196 = vmul.f32 %v195, %v193
    %v197 = vmul.f32 %v196, %v195
    %v198 = vmul.f32 0.5, %v197
    %v199 = vsub.f32 1.5, %v198
    %v200 = vmul.f32 %v195, %v199
    %vm201 = vweird.f32 %v193
    %vm202 = vweird.f32 %v195
    %vm203 = vmor %vm201, %vm202
    %v204 = vsel %vm203, %v195, %v200
    %v205 = vrsqrt.pop %v194
    %v206 = vmul.f32 %v205, %v194
    %v207 = vmul.f32 %v206, %v205
    %v208 = vmul.f32 0.5, %v207
    %v209 = vsub.f32 1.5, %v208
    %v210 = vmul.f32 %v205, %v209
    %vm211 = vweird.f32 %v194
    %vm212 = vweird.f32 %v205
    %vm213 = vmor %vm211, %vm212
    %v214 = vsel %vm213, %v205, %v210
    %v215 = vmul.f32 %v181, %v204
    %v216 = vmul.f32 %v182, %v214
    %v217 = vld [vmem:[%s3] sm:$0x1]
    %v219 = vperm.slane %v217, 0
    %v221 = vmul.f32 %v215, %v219
    %v222 = vmul.f32 %v216, %v219
    %v223 = vld [vmem:[%s4] sm:$0x1]
    %v225 = vperm.slane %v223, 0
    %v227 = vadd.f32 %v221, %v225
    %v228 = vadd.f32 %v222, %v225
    %v229 = vmul.f32 %v227, 0.5
    %v230 = vmul.f32 %v228, 0.5
    %v231 = vmul.f32 %v227, 0.70710677
    %v232 = vmul.f32 %v228, 0.70710677
    %v233 = vmul.f32 %v231, %v231
    %v234 = vmin.f32 16.0, %v233
    %v235 = vmul.f32 %v234, 2.1237322e-06
    %v236 = vadd.f32 %v235, 0.00028619796
    %v237 = vmul.f32 %v234, %v236
    %v238 = vadd.f32 %v237, 0.0036580483
    %v239 = vmul.f32 %v234, %v238
    %v240 = vadd.f32 %v239, 0.05243302
    %v241 = vmul.f32 %v234, %v240
    %v242 = vadd.f32 %v241, 0.18741608
    %v243 = vmul.f32 %v234, %v242
    %v244 = vadd.f32 %v243, 1.1283791
    %v245 = vmul.f32 %v231, %v244
    %v246 = vmul.f32 %v234, 3.8918573e-05
    %v247 = vadd.f32 %v246, 0.001143296
    %v248 = vmul.f32 %v234, %v247
    %v249 = vadd.f32 %v248, 0.014752088
    %v250 = vmul.f32 %v234, %v249
    %v251 = vadd.f32 %v250, 0.112945676
    %v252 = vmul.f32 %v234, %v251
    %v253 = vadd.f32 %v252, 0.4994258
    %v254 = vmul.f32 %v234, %v253
    %v255 = vadd.f32 %v254, 1.0
    %v256 = vrcp.pop %v255
    %v257 = vmul.f32 %v255, %v256
    %v258 = vsub.f32 1.0, %v257
    %v259 = vmul.f32 %v256, %v258
    %v260 = vadd.f32 %v256, %v259
    %vm261 = vweird.f32 %v255
    %vm262 = vweird.f32 %v256
    %vm263 = vmor %vm261, %vm262
    %v264 = vsel %vm263, %v256, %v260
    %v265 = vand.u32 2147483647, %v255
    %vm266 = vcmp.eq.f32.partialorder %v265, 8.507059e+37
    %v267 = vand.u32 %v255, 2147483648
    %v268 = vor.u32 1.1754944e-38, %v267
    %v269 = vsel %vm266, %v268, %v264
    %v270 = vmul.f32 %v245, %v269
    %v271 = vmin.f32 %v270, 1.0
    %v272 = vmax.f32 %v271, -1.0
    %v273 = vmul.f32 %v232, %v232
    %v274 = vmin.f32 16.0, %v273
    %v275 = vmul.f32 %v274, 2.1237322e-06
    %v276 = vadd.f32 %v275, 0.00028619796
    %v277 = vmul.f32 %v274, %v276
    %v278 = vadd.f32 %v277, 0.0036580483
    %v279 = vmul.f32 %v274, %v278
    %v280 = vadd.f32 %v279, 0.05243302
    %v281 = vmul.f32 %v274, %v280
    %v282 = vadd.f32 %v281, 0.18741608
    %v283 = vmul.f32 %v274, %v282
    %v284 = vadd.f32 %v283, 1.1283791
    %v285 = vmul.f32 %v232, %v284
    %v286 = vmul.f32 %v274, 3.8918573e-05
    %v287 = vadd.f32 %v286, 0.001143296
    %v288 = vmul.f32 %v274, %v287
    %v289 = vadd.f32 %v288, 0.014752088
    %v290 = vmul.f32 %v274, %v289
    %v291 = vadd.f32 %v290, 0.112945676
    %v292 = vmul.f32 %v274, %v291
    %v293 = vadd.f32 %v292, 0.4994258
    %v294 = vmul.f32 %v274, %v293
    %v295 = vadd.f32 %v294, 1.0
    %v296 = vrcp.pop %v295
    %v297 = vmul.f32 %v295, %v296
    %v298 = vsub.f32 1.0, %v297
    %v299 = vmul.f32 %v296, %v298
    %v300 = vadd.f32 %v296, %v299
    %vm301 = vweird.f32 %v295
    %vm302 = vweird.f32 %v296
    %vm303 = vmor %vm301, %vm302
    %v304 = vsel %vm303, %v296, %v300
    %v305 = vand.u32 2147483647, %v295
    %vm306 = vcmp.eq.f32.partialorder %v305, 8.507059e+37
    %v307 = vand.u32 %v295, 2147483648
    %v308 = vor.u32 1.1754944e-38, %v307
    %v309 = vsel %vm306, %v308, %v304
    %v310 = vmul.f32 %v285, %v309
    %v311 = vmin.f32 %v310, 1.0
    %v312 = vmax.f32 %v311, -1.0
    %v313 = vadd.f32 %v272, 1.0
    %v314 = vadd.f32 %v312, 1.0
    %v315 = vmul.f32 %v229, %v313
    %v316 = vmul.f32 %v230, %v314
    %v317 = vld [vmem:[#allocation7] sm:$0xff]
    %v318 = vld [vmem:[#allocation7 + $0x8] sm:$0xff]
    %v319 = vld [vmem:[#allocation7 + $0x10] sm:$0xff]
    %v320 = vld [vmem:[#allocation7 + $0x18] sm:$0xff]
    %v321 = vld [vmem:[#allocation7 + $0x20] sm:$0xff]
    %v322 = vld [vmem:[#allocation7 + $0x28] sm:$0xff]
    %v323 = vld [vmem:[#allocation7 + $0x30] sm:$0xff]
    %v324 = vld [vmem:[#allocation7 + $0x38] sm:$0xff]
    %v325 = vld [vmem:[%s6] sm:$0x1]
    %v327 = vperm.slane %v325, 0
    %v330 = vsel %vm165, %v315, 0
    %v333 = vsel %vm165, %v316, 0
    %335 = vmatpush.msra.mxu0 0.0
    %336 = vmatpush.msra.mxu0 0.0
    %337 = vmatpush.msra.mxu0 0.0
    %338 = vmatpush.msra.mxu0 0.0
    %339 = vmatpush.msra.mxu0 0.0
    %340 = vmatpush.msra.mxu0 0.0
    %341 = vmatpush.msra.mxu0 0.0
    %342 = vmatpush.msra.mxu0 0.0
    %343 = vmatpush.msra.mxu0 %v324
    %344 = vmatpush.msra.mxu0 %v323
    %345 = vmatpush.msra.mxu0 %v322
    %346 = vmatpush.msra.mxu0 %v321
    %347 = vmatpush.msra.mxu0 %v320
    %348 = vmatpush.msra.mxu0 %v319
    %349 = vmatpush.msra.mxu0 %v318
    %350 = vmatpush.msra.mxu0 %v317
    %351 = vmatmul.f32.gmra.mxu0 %v330
    %v352 = vpop.f32.mrf.mxu0
    %v353 = vadd.f32 %v327, %v352
    %354 = vmatmul.f32.gmra.mxu0 %v333
    %v355 = vpop.f32.mrf.mxu0
    %v356 = vadd.f32 %v327, %v355
    %357 = vdwg.mxu0
    %358 = vst [vmem:[#allocation8] sm:$0xff] %v353
    %359 = vst [vmem:[#allocation8 + $0x8] sm:$0xff] %v356
    // Predicated region
    $region42: #{tpu_custom_call.1} parent=1 // pred_check
      _
    $region43: #{tpu_custom_call.1} parent=1 // pred_check_branch
      %361 = sbr.rel (0) target = $region45
    $region44: #{tpu_custom_call.1} parent=1 // pred_region
      %363 = vsyncadd [#allocation4], 0
      %s364 = sshll.u32 [#allocation8], 4
      %s365 = int_to_ptr.vmem [resolvable:$true] %s364
      %s366 = sshll.u32 %s7, 4
      %s367 = int_to_ptr.hbm [resolvable:$true] %s366
      %372 = dma.vmem_to_hbm [thread:$0]  %s365, 256, %s367, [#allocation4], 128, 128, 8
    $region45: #{tpu_custom_call.1} parent=1 // pred_fallthru
      _
    // Predicated region
    $region46: #{tpu_custom_call.1} parent=1 // pred_check
      _
    $region47: #{tpu_custom_call.1} parent=1 // pred_check_branch
      %374 = sbr.rel (0) target = $region49
    $region48: #{tpu_custom_call.1} parent=1 // pred_region
      %376 = dma.done [#allocation4], 256
    $region49: #{tpu_custom_call.1} parent=1 // pred_fallthru
      _
    %377 = vsyncpa [#allocation3], 1
    %378 = vsyncpa [#allocation6], 1
    %379 = vsyncpa [#allocation4], 1

</llo_original>
